<compile_context>
chip_gen: v7x
topology: tpu7x:2x2x1
jax: 0.10.0
libtpu: 0.0.40
codegen_flags: <defaults>
</compile_context>

<pallas_src>
import functools
import numpy as np
import jax
import jax.numpy as jnp
from jax import lax
from jax.experimental import pallas as pl
from jax.experimental.pallas import tpu as pltpu

# ----------------------- configuration (small, deterministic) -----------------
OGF_H, OGF_W = 32, 32
DOWNSAMPLE = 8
FH, FW = OGF_H // DOWNSAMPLE, OGF_W // DOWNSAMPLE          # 4, 4
P = FH * FW                                                 # 16
C_IN = 16
C_OUT = 8
DBOUND = (4.0, 20.0, 2.0)                                   # UD depth discretization
DEPTH_VALS = np.arange(*DBOUND, dtype=np.float32)
D = DEPTH_VALS.shape[0]                                     # 8
GRID_RES = (1.0, 1.0, 1.0)
OFFSET = (-8.0, -8.0, -2.0)
GRID_SIZE = (17.0, 17.0)
GRID_HEIGHT = 5.0
B, N = 1, 2                                                 # batch, num cameras

NX0 = int(GRID_SIZE[0] / GRID_RES[0] - 1)                   # 16
NX1 = int(GRID_SIZE[1] / GRID_RES[1] - 1)                   # 16
NX2 = int(GRID_HEIGHT / GRID_RES[2] - 1)                    # 4
VB = NX2 * NX1 * NX0                                        # voxels per batch (z-major)

# depth-slot selector: d_wide[:, di*C_OUT+ci] = depth[:, di]
# built ONCE at trace time (numpy), passed to the kernel as a 2 KB constant input.
SEL_D = np.kron(np.eye(D, dtype=np.float32), np.ones((1, C_OUT), dtype=np.float32))


# ----------------------- module "parameters" (plain JAX glue) ------------------
def gen_dx_bx_new():
    dx = jnp.asarray(GRID_RES, jnp.float32)
    bx = jnp.asarray([o + r / 2.0 for o, r in zip(OFFSET, GRID_RES)], jnp.float32)
    nx = jnp.asarray([float(NX0), float(NX1), float(NX2)], jnp.float32)
    return dx, bx, nx


def create_frustum():
    ds = np.broadcast_to(DEPTH_VALS.reshape(-1, 1, 1), (D, FH, FW))
    xs = np.broadcast_to(
        np.linspace(0, OGF_W - 1, FW, dtype=np.float32).reshape(1, 1, FW), (D, FH, FW))
    ys = np.broadcast_to(
        np.linspace(0, OGF_H - 1, FH, dtype=np.float32).reshape(1, FH, 1), (D, FH, FW))
    return jnp.asarray(np.stack((xs, ys, ds), -1).astype(np.float32))   # (D, FH, FW, 3)


# ----------------------- Pallas kernel 1: depthnet + softmax + lift ------------
def _lift_kernel(x_ref, w_ref, b_ref, seld_ref, out_ref, *, d):
    # x_ref:    (R, C_in)           flattened pixels (row order: b, n, h, w)
    # w_ref:    (C_in, d + d*C_out) folded depthnet weight (feature cols tiled per depth slot)
    # b_ref:    (1, d + d*C_out)    folded bias
    # seld_ref: (d, d*C_out)        constant depth-slot selector
    # out_ref:  (R, d*C_out)        lifted features, out[r, di*C_out + ci]
    y = jnp.dot(x_ref[...], w_ref[...], preferred_element_type=jnp.float32) + b_ref[...]
    logits = y[:, :d]                                     # (R, d)
    f_wide = y[:, d:]                                     # (R, d*C_out) feat already replicated

    # softmax over depth channels (matches x.softmax(dim=1) in NCHW); exact reciprocal.
    m = jnp.max(logits, axis=-1, keepdims=True)
    e = jnp.exp(logits - m)
    depth = e / jnp.sum(e, axis=-1, keepdims=True)

    # broadcast depth to width d*C_out with one tiny constant matmul, then one slab store.
    d_wide = jnp.dot(depth, seld_ref[...], preferred_element_type=jnp.float32)
    out_ref[...] = d_wide * f_wide


def depth_lift_pallas(x2d, w_fold, b_fold, *, block_rows=None):
    """x2d: (R, C_in) -> (R, D*C_out) with out[r, di*C_out + ci] = softmax_di * feat_ci."""
    rows, cin = x2d.shape
    cols = w_fold.shape[1]                 # D + D*C_OUT
    out_cols = cols - D                    # D*C_OUT
    if block_rows is None:
        block_rows = rows                  # whole (tiny) problem resident; tile when R grows
    assert rows % block_rows == 0
    kernel = functools.partial(_lift_kernel, d=D)
    return pl.pallas_call(
        kernel,
        out_shape=jax.ShapeDtypeStruct((rows, out_cols), jnp.float32),
        grid=(rows // block_rows,),
        in_specs=[
            pl.BlockSpec((block_rows, cin), lambda i: (i, 0)),
            pl.BlockSpec((cin, cols), lambda i: (0, 0)),
            pl.BlockSpec((1, cols), lambda i: (0, 0)),
            pl.BlockSpec((D, D * C_OUT), lambda i: (0, 0)),
        ],
        out_specs=pl.BlockSpec((block_rows, out_cols), lambda i: (i, 0)),
        compiler_params=pltpu.CompilerParams(dimension_semantics=("parallel",)),
    )(x2d, w_fold, b_fold, jnp.asarray(SEL_D))


# ----------------------- Pallas kernel 2: voxel pooling (segment sum) ----------
def _pool_kernel(ranks_ref, pts_ref, out_ref, *, vox_block):
    # ranks_ref: (1, n_pts) int32 voxel rank per point, -1 for dropped points
    # pts_ref:   (n_pts, C) lifted point features
    # out_ref:   (vox_block, C) per-voxel sums for voxels [i*vox_block, (i+1)*vox_block)
    v0 = pl.program_id(0) * vox_block
    ranks = ranks_ref[...]
    vid = lax.broadcasted_iota(jnp.int32, (vox_block, ranks.shape[-1]), 0) + v0
    onehot = (vid == ranks).astype(jnp.float32)            # -1 ranks match nothing
    out_ref[...] = jnp.dot(onehot, pts_ref[...], preferred_element_type=jnp.float32)


def voxel_pool_pallas(ranks, pts, n_vox, *, vox_block=None):
    """Segment-sum pts (n_pts, C) into (n_vox, C) by rank via a one-hot MXU matmul."""
    n_pts, c = pts.shape
    if vox_block is None:
        vox_block = n_vox                  # single step today; tile + "parallel" at scale
    assert n_vox % vox_block == 0
    kernel = functools.partial(_pool_kernel, vox_block=vox_block)
    return pl.pallas_call(
        kernel,
        out_shape=jax.ShapeDtypeStruct((n_vox, c), jnp.float32),
        grid=(n_vox // vox_block,),
        in_specs=[
            pl.BlockSpec((1, n_pts), lambda i: (0, 0)),
            pl.BlockSpec((n_pts, c), lambda i: (0, 0)),
        ],
        out_specs=pl.BlockSpec((vox_block, c), lambda i: (i, 0)),
        compiler_params=pltpu.CompilerParams(dimension_semantics=("parallel",)),
    )(ranks.reshape(1, n_pts), pts)


# ----------------------- geometry (plain JAX glue) ------------------------------
def get_geometry(frustum, rots, trans, intrins, post_rots, post_trans):
    Bb, Nn = trans.shape[:2]
    points = frustum[None, None] - post_trans.reshape(Bb, Nn, 1, 1, 1, 3)
    inv_post = jnp.linalg.inv(post_rots).reshape(Bb, Nn, 1, 1, 1, 3, 3)
    points = jnp.matmul(inv_post, points[..., None])                    # (B,N,D,H,W,3,1)
    points = jnp.concatenate(
        [points[..., :2, :] * points[..., 2:3, :], points[..., 2:3, :]], axis=-2)
    combine = jnp.matmul(rots, jnp.linalg.inv(intrins)).reshape(Bb, Nn, 1, 1, 1, 3, 3)
    points = jnp.matmul(combine, points)[..., 0]
    points = points + trans.reshape(Bb, Nn, 1, 1, 1, 3)
    return points                                                       # (B,N,D,H,W,3)


def voxel_pooling(geom_p, pts, dx, bx, nx, neck):
    # geom_p (nprime,3) and pts (nprime,C) are flattened in the SAME point order
    # (b, n, h, w, d).  Rank computation matches the torch sort/QuickCumsum key:
    # one unique rank per (batch, z, y, x) voxel; per-voxel sums are then equal.
    nprime = pts.shape[0]
    g = ((geom_p - (bx - dx / 2.0)) / dx).astype(jnp.int32)             # trunc, like .long()
    nx_i = nx.astype(jnp.int32)
    kept = ((g[:, 0] >= 0) & (g[:, 0] < nx_i[0]) &
            (g[:, 1] >= 0) & (g[:, 1] < nx_i[1]) &
            (g[:, 2] >= 0) & (g[:, 2] < nx_i[2]))
    batch_ix = jnp.repeat(jnp.arange(B, dtype=jnp.int32), nprime // B)
    rank = batch_ix * VB + g[:, 2] * (NX1 * NX0) + g[:, 1] * NX0 + g[:, 0]
    rank = jnp.where(kept, rank, -1).astype(jnp.int32)

    vox = voxel_pool_pallas(rank, pts, B * VB)                          # (B*VB, C_OUT)
    final = jnp.transpose(vox.reshape(B, NX2, NX1, NX0, C_OUT), (0, 4, 1, 2, 3))
    if neck == "2d":
        final = final[:, :, 0]
    else:
        final = jnp.transpose(final, (0, 1, 3, 4, 2))                   # (B,C,NX1,NX0,NX2)
    return final


def lift_forward(params, x_nchw, intrins, imu2c, post_rots, post_trans, undistorts, neck="3d"):
    # x_nchw: (B*N, C_in, fH, fW)  (NCHW like the PyTorch conv input)
    x2d = jnp.transpose(x_nchw, (0, 2, 3, 1)).reshape(B * N * P, C_IN)

    # Fold the per-depth feature replication (sel_c) into the depthnet weights/bias:
    # the kernel's single matmul emits the D*C_OUT-wide feature slab directly.
    w, b = params["w"], params["b"]
    w_fold = jnp.concatenate([w[:, :D], jnp.tile(w[:, D:D + C_OUT], (1, D))], axis=1)
    b_fold = jnp.concatenate([b[:, :D], jnp.tile(b[:, D:D + C_OUT], (1, D))], axis=1)

    lifted = depth_lift_pallas(x2d, w_fold, b_fold)      # (B*N*H*W, D*C_OUT), d-major/c-minor
    # point-major view (b, n, h, w, d) with channel innermost — a free reshape,
    # no HBM relayout of the lifted feature tensor.
    pts = lifted.reshape(B * N * P * D, C_OUT)

    c2imu = jnp.linalg.inv(imu2c)
    rots = c2imu[..., :3, :3]
    trans = c2imu[..., :3, -1]
    intr = intrins[..., :3, :3]
    geom = get_geometry(params["frustum"], rots, trans, intr, post_rots, post_trans)
    # transpose the small 3-channel geometry into the same point order instead
    # of relayouting the larger lifted feature tensor.
    geom_p = jnp.transpose(geom, (0, 1, 3, 4, 2, 5)).reshape(B * N * P * D, 3)
    return voxel_pooling(geom_p, pts, params["dx"], params["bx"], params["nx"], neck)


# ----------------------- pure-JAX references (test-only) ------------------------
def depth_lift_ref(x2d, w, b):
    y = x2d @ w + b
    depth = jax.nn.softmax(y[:, :D], axis=-1)
    feat = y[:, D:D + C_OUT]
    return (depth[:, :, None] * feat[:, None, :]).reshape(x2d.shape[0], D * C_OUT)


def lift_forward_ref(params, x_nchw, intrins, imu2c, post_rots, post_trans, undistorts, neck="3d"):
    # Mirrors the torch path (transpose + scatter-add); QuickCumsum + indexed
    # assignment of per-voxel sums is equivalent to a per-voxel scatter-add.
    x2d = jnp.transpose(x_nchw, (0, 2, 3, 1)).reshape(B * N * P, C_IN)
    lifted = depth_lift_ref(x2d, params["w"], params["b"])
    x6 = jnp.transpose(lifted.reshape(B, N, FH, FW, D, C_OUT), (0, 1, 4, 2, 3, 5))

    c2imu = jnp.linalg.inv(imu2c)
    rots = c2imu[..., :3, :3]
    trans = c2imu[..., :3, -1]
    intr = intrins[..., :3, :3]
    geom = get_geometry(params["frustum"], rots, trans, intr, post_rots, post_trans)

    nprime = B * N * D * FH * FW
    xf = x6.reshape(nprime, C_OUT)
    g = ((geom.reshape(nprime, 3) - (params["bx"] - params["dx"] / 2.0)) / params["dx"]
         ).astype(jnp.int32)
    nx_i = params["nx"].astype(jnp.int32)
    kept = ((g[:, 0] >= 0) & (g[:, 0] < nx_i[0]) &
            (g[:, 1] >= 0) & (g[:, 1] < nx_i[1]) &
            (g[:, 2] >= 0) & (g[:, 2] < nx_i[2]))
    batch_ix = jnp.repeat(jnp.arange(B, dtype=jnp.int32), nprime // B)
    gx = jnp.clip(g[:, 0], 0, NX0 - 1)
    gy = jnp.clip(g[:, 1], 0, NX1 - 1)
    gz = jnp.clip(g[:, 2], 0, NX2 - 1)
    vals = jnp.where(kept[:, None], xf, 0.0)
    final_t = jnp.zeros((B, NX2, NX1, NX0, C_OUT), jnp.float32)
    final_t = final_t.at[batch_ix, gz, gy, gx].add(vals)
    final = jnp.transpose(final_t, (0, 4, 1, 2, 3))
    if neck == "2d":
        final = final[:, :, 0]
    else:
        final = jnp.transpose(final, (0, 1, 3, 4, 2))
    return final


# ----------------------------------- main --------------------------------------
if __name__ == "__main__":
    key = jax.random.PRNGKey(0)
    k1, k2, k3 = jax.random.split(key, 3)

    # deterministic depthnet (1x1 conv) parameters: weight (C_in, D+C_out), bias (1, D+C_out)
    w = jax.random.normal(k1, (C_IN, D + C_OUT), jnp.float32) * 0.1
    b = jax.random.normal(k2, (1, D + C_OUT), jnp.float32) * 0.1

    dx, bx, nx = gen_dx_bx_new()
    params = dict(w=w, b=b, frustum=create_frustum(), dx=dx, bx=bx, nx=nx)

    # image features (B*N, C_in, fH, fW)
    x = jax.random.normal(k3, (B * N, C_IN, FH, FW), jnp.float32)

    # camera parameters
    intrins = jnp.broadcast_to(
        jnp.array([[10.0, 0.0, 15.5],
                   [0.0, 10.0, 15.5],
                   [0.0, 0.0, 1.0]], jnp.float32), (B, N, 3, 3))
    R_c2imu = jnp.array([[0.0, 0.0, 1.0],
                         [-1.0, 0.0, 0.0],
                         [0.0, -1.0, 0.0]], jnp.float32)
    c2imu = jnp.eye(4, dtype=jnp.float32).at[:3, :3].set(R_c2imu).at[:3, 3].set(
        jnp.array([0.5, 0.0, 0.0], jnp.float32))
    imu2c = jnp.broadcast_to(jnp.linalg.inv(c2imu), (B, N, 4, 4))
    post_rots = jnp.broadcast_to(jnp.eye(3, dtype=jnp.float32), (B, N, 3, 3))
    post_trans = jnp.zeros((B, N, 3), jnp.float32)
    undistorts = jnp.zeros((B, N, 4), jnp.float32)   # unused, as in the torch forward

    # one-shot sanity check of the lift kernel (folded weights vs. unfolded reference);
    # exact softmax reciprocal -> tight tolerance
    x2d_test = jnp.transpose(x, (0, 2, 3, 1)).reshape(B * N * P, C_IN)
    wf = jnp.concatenate([w[:, :D], jnp.tile(w[:, D:D + C_OUT], (1, D))], axis=1)
    bf = jnp.concatenate([b[:, :D], jnp.tile(b[:, D:D + C_OUT], (1, D))], axis=1)
    got = jax.block_until_ready(depth_lift_pallas(x2d_test, wf, bf))
    ref = depth_lift_ref(x2d_test, w, b)
    np.testing.assert_allclose(np.asarray(got), np.asarray(ref), rtol=1e-4, atol=1e-5)

    # jitted end-to-end forward + check against the torch-equivalent reference path
    fwd = jax.jit(lift_forward, static_argnames=("neck",))
    out = fwd(params, x, intrins, imu2c, post_rots, post_trans, undistorts, neck="3d")
    out = jax.block_until_ready(out)
    out_ref = lift_forward_ref(params, x, intrins, imu2c, post_rots, post_trans,
                               undistorts, neck="3d")
    np.testing.assert_allclose(np.asarray(out), np.asarray(out_ref), rtol=1e-4, atol=1e-4)
    assert out.shape == (B, C_OUT, NX1, NX0, NX2), out.shape
    print("KERNEL_OK")
</pallas_src>

<mosaic_0001>
module attributes {stable_mosaic.version = 11 : i64} {
  func.func @_lift_kernel(%arg0: i32, %arg1: memref<32x16xf32, #tpu.memory_space<vmem>>, %arg2: memref<16x72xf32, #tpu.memory_space<vmem>>, %arg3: memref<1x72xf32, #tpu.memory_space<vmem>>, %arg4: memref<8x64xf32, #tpu.memory_space<vmem>>, %arg5: memref<32x64xf32, #tpu.memory_space<vmem>>) attributes {dimension_semantics = [#tpu.dimension_semantics<parallel>], iteration_bounds = array<i64: 1>, scalar_prefetch = 0 : i64, scratch_operands = 0 : i64, tpu.core_type = #tpu.core_type<tc>, window_params = [{transform_indices = @transform_0, window_bounds = array<i64: 32, 16>}, {pipeline_mode = #tpu.pipeline_mode<synchronous>, transform_indices = @transform_1, window_bounds = array<i64: 16, 72>}, {pipeline_mode = #tpu.pipeline_mode<synchronous>, transform_indices = @transform_2, window_bounds = array<i64: 1, 72>}, {pipeline_mode = #tpu.pipeline_mode<synchronous>, transform_indices = @transform_3, window_bounds = array<i64: 8, 64>}, {transform_indices = @transform_4, window_bounds = array<i64: 32, 64>}]} {
    %c0 = arith.constant 0 : index
    %c0_0 = arith.constant 0 : index
    %0 = vector.load %arg1[%c0, %c0_0] : memref<32x16xf32, #tpu.memory_space<vmem>>, vector<32x16xf32>
    %c0_1 = arith.constant 0 : index
    %c0_2 = arith.constant 0 : index
    %1 = vector.load %arg2[%c0_1, %c0_2] : memref<16x72xf32, #tpu.memory_space<vmem>>, vector<16x72xf32>
    %cst = arith.constant dense<0.000000e+00> : vector<32x72xf32>
    %2 = tpu.matmul %0, %1, %cst {dimension_numbers = #tpu.dot_dimension_numbers<[1], [0], [0], [1], [0, 0, 1, 1], [], []>} : vector<32x16xf32>, vector<16x72xf32>, vector<32x72xf32> -> vector<32x72xf32>
    %c0_3 = arith.constant 0 : index
    %c0_4 = arith.constant 0 : index
    %3 = vector.load %arg3[%c0_3, %c0_4] : memref<1x72xf32, #tpu.memory_space<vmem>>, vector<1x72xf32>
    %4 = vector.broadcast %3 : vector<1x72xf32> to vector<32x72xf32>
    %5 = arith.addf %2, %4 : vector<32x72xf32>
    %6 = vector.extract_strided_slice %5 {offsets = [0, 0], sizes = [32, 8], strides = [1, 1]} : vector<32x72xf32> to vector<32x8xf32>
    %7 = vector.extract_strided_slice %5 {offsets = [0, 8], sizes = [32, 64], strides = [1, 1]} : vector<32x72xf32> to vector<32x64xf32>
    %cst_5 = arith.constant dense<0xFF800000> : vector<32xf32>
    %8 = vector.multi_reduction <maximumf>, %6, %cst_5 [1] : vector<32x8xf32> to vector<32xf32>
    %9 = vector.shape_cast %8 : vector<32xf32> to vector<32x1xf32>
    %10 = vector.broadcast %9 : vector<32x1xf32> to vector<32x8xf32>
    %11 = arith.subf %6, %10 : vector<32x8xf32>
    %12 = math.exp %11 : vector<32x8xf32>
    %cst_6 = arith.constant dense<0.000000e+00> : vector<32xf32>
    %13 = vector.multi_reduction <add>, %12, %cst_6 [1] : vector<32x8xf32> to vector<32xf32>
    %14 = vector.shape_cast %13 : vector<32xf32> to vector<32x1xf32>
    %15 = vector.broadcast %14 : vector<32x1xf32> to vector<32x8xf32>
    %16 = arith.divf %12, %15 : vector<32x8xf32>
    %c0_7 = arith.constant 0 : index
    %c0_8 = arith.constant 0 : index
    %17 = vector.load %arg4[%c0_7, %c0_8] : memref<8x64xf32, #tpu.memory_space<vmem>>, vector<8x64xf32>
    %cst_9 = arith.constant dense<0.000000e+00> : vector<32x64xf32>
    %18 = tpu.matmul %16, %17, %cst_9 {dimension_numbers = #tpu.dot_dimension_numbers<[1], [0], [0], [1], [0, 0, 1, 1], [], []>} : vector<32x8xf32>, vector<8x64xf32>, vector<32x64xf32> -> vector<32x64xf32>
    %19 = arith.mulf %18, %7 : vector<32x64xf32>
    %c0_10 = arith.constant 0 : index
    %c0_11 = arith.constant 0 : index
    %20 = vector.load %arg5[%c0_10, %c0_11] : memref<32x64xf32, #tpu.memory_space<vmem>>, vector<32x64xf32>
    tpu.vector_store %arg5[%c0_10, %c0_11], %19 {strides = array<i32>} : memref<32x64xf32, #tpu.memory_space<vmem>>, vector<32x64xf32>,
    return
  }
  func.func @transform_0(%arg0: i32) -> (i32, i32) {
    %c0_i32 = arith.constant 0 : i32
    %c0_i32_0 = arith.constant 0 : i32
    return %arg0, %c0_i32 : i32, i32
  }
  func.func @transform_1(%arg0: i32) -> (i32, i32) {
    %c0_i32 = arith.constant 0 : i32
    %c0_i32_0 = arith.constant 0 : i32
    %c0_i32_1 = arith.constant 0 : i32
    return %c0_i32, %c0_i32_0 : i32, i32
  }
  func.func @transform_2(%arg0: i32) -> (i32, i32) {
    %c0_i32 = arith.constant 0 : i32
    %c0_i32_0 = arith.constant 0 : i32
    %c0_i32_1 = arith.constant 0 : i32
    return %c0_i32, %c0_i32_0 : i32, i32
  }
  func.func @transform_3(%arg0: i32) -> (i32, i32) {
    %c0_i32 = arith.constant 0 : i32
    %c0_i32_0 = arith.constant 0 : i32
    %c0_i32_1 = arith.constant 0 : i32
    return %c0_i32, %c0_i32_0 : i32, i32
  }
  func.func @transform_4(%arg0: i32) -> (i32, i32) {
    %c0_i32 = arith.constant 0 : i32
    %c0_i32_0 = arith.constant 0 : i32
    return %arg0, %c0_i32 : i32, i32
  }
}

</mosaic_0001>

<llo_original>
// kernel: tpu_custom_call.1
$region0: #{tpu_custom_call.1}
  #allocation0 [shape = 'u32[]', space=smem, size = 0x4, offset = 0x4, fixed_abs, tag = 'smem constant byte address 0x4 - core index']
  #allocation1 [shape = 'u32[144,128]{1,0:T(1,128)}', space=vmem, size = 0x12000, scoped, tag = 'internal scratch']
  %s0 = inlined_call_operand.vmem [shape: f32[32,16], index: 0, kind: input, shape index: {}]
  %s1 = inlined_call_operand.vmem [shape: f32[16,72], index: 1, kind: input, shape index: {}]
  %s2 = inlined_call_operand.vmem [shape: f32[1,72], index: 2, kind: input, shape index: {}]
  %s3 = inlined_call_operand.vmem [shape: f32[8,64], index: 3, kind: input, shape index: {}]
  %s4 = inlined_call_operand.hbm [shape: f32[32,64], index: 4, kind: output, shape index: {}]
  %s5 = sld [smem:[#allocation0]]
  $region26: #{tpu_custom_call.1} parent=0
    _
  %s7 = ssub.s32 1, %s5
  %s8 = scalar_select 0, %s7, %s5
  $region1: #{tpu_custom_call.1} parent=0
    #allocation2 [shape = 'u8[16384]{0}', space=vmem, size = 0x4000, scoped, tag = 'output window, operand 0, single buffered']
    #allocation3 [shape = 's32[1]{0}', space=sflag, size = 0x4, scoped, tag = 'scoped memory for tpu_custom_call.1']
    %9 = vsyncpa [#allocation3], 0
    // Predicated region
    $region2: #{tpu_custom_call.1} parent=1 // pred_check
      _
    $region3: #{tpu_custom_call.1} parent=1 // pred_check_branch
      %11 = sbr.rel (0) target = $region5
    $region4: #{tpu_custom_call.1} parent=1 // pred_region
      _
    $region5: #{tpu_custom_call.1} parent=1 // pred_fallthru
      _
    // Predicated region
    $region6: #{tpu_custom_call.1} parent=1 // pred_check
      _
    $region7: #{tpu_custom_call.1} parent=1 // pred_check_branch
      %13 = sbr.rel (0) target = $region9
    $region8: #{tpu_custom_call.1} parent=1 // pred_region
      _
    $region9: #{tpu_custom_call.1} parent=1 // pred_fallthru
      _
    // Predicated region
    $region10: #{tpu_custom_call.1} parent=1 // pred_check
      _
    $region11: #{tpu_custom_call.1} parent=1 // pred_check_branch
      %15 = sbr.rel (0) target = $region13
    $region12: #{tpu_custom_call.1} parent=1 // pred_region
      _
    $region13: #{tpu_custom_call.1} parent=1 // pred_fallthru
      _
    // Predicated region
    $region14: #{tpu_custom_call.1} parent=1 // pred_check
      _
    $region15: #{tpu_custom_call.1} parent=1 // pred_check_branch
      %17 = sbr.rel (0) target = $region17
    $region16: #{tpu_custom_call.1} parent=1 // pred_region
      _
    $region17: #{tpu_custom_call.1} parent=1 // pred_fallthru
      _
    %v18 = vld [vmem:[%s0] sm:$0xff]
    %v19 = vld [vmem:[%s0 + $0x8] sm:$0xff]
    %v20 = vld [vmem:[%s0 + $0x10] sm:$0xff]
    %v21 = vld [vmem:[%s0 + $0x18] sm:$0xff]
    %v22 = vld [vmem:[%s1] sm:$0xff]
    %v23 = vld [vmem:[%s1 + $0x8] sm:$0xff]
    %v24 = vld [vmem:[%s2] sm:$0x1]
    %v26 = vlaneseq
    %v27 = vshrl.u32 %v26, 7
    %v28 = vsub.s32 0, %v27
    %v29 = vrot.slane %v24, %v28
    %vm31 = vcmask 130048
    %v33 = vsel %vm31, %v18, 0
    %v36 = vsel %vm31, %v19, 0
    %v39 = vsel %vm31, %v20, 0
    %v42 = vsel %vm31, %v21, 0
    %44 = vmatprep.subr.mxu0 0.0
    %45 = vmatpush1.msra.mxu0 %v22
    %46 = vmatprep.subr.mxu0 0.0
    %47 = vmatpush1.msra.mxu0 %v23
    %48 = vmatprep.subr.mxu0 0.0
    %49 = vmatpush1.msra.mxu0 0.0
    %50 = vmatprep.subr.mxu0 0.0
    %51 = vmatpush1.msra.mxu0 0.0
    %52 = vmatprep.subr.mxu0 0.0
    %53 = vmatpush1.msra.mxu0 0.0
    %54 = vmatprep.subr.mxu0 0.0
    %55 = vmatpush1.msra.mxu0 0.0
    %56 = vmatprep.subr.mxu0 0.0
    %57 = vmatpush1.msra.mxu0 0.0
    %58 = vmatprep.subr.mxu0 0.0
    %59 = vmatpush1.msra.mxu0 0.0
    %60 = vmatprep.subr.mxu0 0.0
    %61 = vmatpush1.msra.mxu0 0.0
    %62 = vmatprep.subr.mxu0 0.0
    %63 = vmatpush1.msra.mxu0 0.0
    %64 = vmatprep.subr.mxu0 0.0
    %65 = vmatpush1.msra.mxu0 0.0
    %66 = vmatprep.subr.mxu0 0.0
    %67 = vmatpush1.msra.mxu0 0.0
    %68 = vmatprep.subr.mxu0 0.0
    %69 = vmatpush1.msra.mxu0 0.0
    %70 = vmatprep.subr.mxu0 0.0
    %71 = vmatpush1.msra.mxu0 0.0
    %72 = vmatprep.subr.mxu0 0.0
    %73 = vmatpush1.msra.mxu0 0.0
    %74 = vmatprep.subr.mxu0 0.0
    %75 = vmatpush1.msra.mxu0 0.0
    %76 = vmatprep.subr.mxu0 0.0
    %77 = vmatpush1.msra.mxu0 0.0
    %78 = vmatprep.subr.mxu0 0.0
    %79 = vmatpush1.msra.mxu0 0.0
    %80 = vmatprep.subr.mxu0 0.0
    %81 = vmatpush1.msra.mxu0 0.0
    %82 = vmatprep.subr.mxu0 0.0
    %83 = vmatpush1.msra.mxu0 0.0
    %84 = vmatprep.subr.mxu0 0.0
    %85 = vmatpush1.msra.mxu0 0.0
    %86 = vmatprep.subr.mxu0 0.0
    %87 = vmatpush1.msra.mxu0 0.0
    %88 = vmatprep.subr.mxu0 0.0
    %89 = vmatpush1.msra.mxu0 0.0
    %90 = vmatprep.subr.mxu0 0.0
    %91 = vmatpush1.msra.mxu0 0.0
    %92 = vmatprep.subr.mxu0 0.0
    %93 = vmatpush1.msra.mxu0 0.0
    %94 = vmatprep.subr.mxu0 0.0
    %95 = vmatpush1.msra.mxu0 0.0
    %96 = vmatprep.subr.mxu0 0.0
    %97 = vmatpush1.msra.mxu0 0.0
    %98 = vmatprep.subr.mxu0 0.0
    %99 = vmatpush1.msra.mxu0 0.0
    %100 = vmatprep.subr.mxu0 0.0
    %101 = vmatpush1.msra.mxu0 0.0
    %102 = vmatprep.subr.mxu0 0.0
    %103 = vmatpush1.msra.mxu0 0.0
    %104 = vmatprep.subr.mxu0 0.0
    %105 = vmatpush1.msra.mxu0 0.0
    %106 = vmatprep.subr.mxu0 0.0
    %107 = vmatpush1.msra.mxu0 0.0
    %108 = vmatprep.mubr.f32.mxu0 0.0
    %109 = vmatmul.mubr.f32.gmra.mrb[0].mxu0 %v33
    %v110 = vpop.f32.mrb[0].mxu0
    %v111 = vadd.f32 %v29, %v110
    %v112 = vpop.f32.mrb[0].mxu0
    %113 = vmatprep.mubr.f32.mxu0 0.0
    %114 = vmatmul.mubr.f32.gmra.mrb[0].mxu0 %v36
    %v115 = vpop.f32.mrb[0].mxu0
    %v116 = vadd.f32 %v29, %v115
    %v117 = vpop.f32.mrb[0].mxu0
    %118 = vmatprep.mubr.f32.mxu0 0.0
    %119 = vmatmul.mubr.f32.gmra.mrb[0].mxu0 %v39
    %v120 = vpop.f32.mrb[0].mxu0
    %v121 = vadd.f32 %v29, %v120
    %v122 = vpop.f32.mrb[0].mxu0
    %123 = vmatprep.mubr.f32.mxu0 0.0
    %124 = vmatmul.mubr.f32.gmra.mrb[0].mxu0 %v42
    %v125 = vpop.f32.mrb[0].mxu0
    %v126 = vadd.f32 %v29, %v125
    %v127 = vpop.f32.mrb[0].mxu0
    %128 = vdwg.mxu0
    %vm129 = vcmask 64512
    %v130 = vsel %vm129, %v111, -inf
    %131 = vmax.xlane.f32.xlu0 %v130
    %v132 = vpop.xlane.xlu0 %131
    %v133 = vsel %vm129, %v116, -inf
    %134 = vmax.xlane.f32.xlu0 %v133
    %v135 = vpop.xlane.xlu0 %134
    %v136 = vsel %vm129, %v121, -inf
    %137 = vmax.xlane.f32.xlu0 %v136
    %v138 = vpop.xlane.xlu0 %137
    %v139 = vsel %vm129, %v126, -inf
    %140 = vmax.xlane.f32.xlu0 %v139
    %v141 = vpop.xlane.xlu0 %140
    %v142 = vsub.f32 %v111, %v132
    %v143 = vsub.f32 %v116, %v135
    %v144 = vsub.f32 %v121, %v138
    %v145 = vsub.f32 %v126, %v141
    %v146 = vmul.f32 %v142, 1.442695
    %v147 = vpow.pop %v146
    %v148 = vmul.f32 %v143, 1.442695
    %v149 = vpow.pop %v148
    %v150 = vmul.f32 %v144, 1.442695
    %v151 = vpow.pop %v150
    %v152 = vmul.f32 %v145, 1.442695
    %v153 = vpow.pop %v152
    %v154 = vsel %vm129, %v147, 0.0
    %155 = vadd.xlane.f32.xlu0 %v154
    %v156 = vpop.xlane.xlu0 %155
    %v157 = vsel %vm129, %v149, 0.0
    %158 = vadd.xlane.f32.xlu0 %v157
    %v159 = vpop.xlane.xlu0 %158
    %v160 = vsel %vm129, %v151, 0.0
    %161 = vadd.xlane.f32.xlu0 %v160
    %v162 = vpop.xlane.xlu0 %161
    %v163 = vsel %vm129, %v153, 0.0
    %164 = vadd.xlane.f32.xlu0 %v163
    %v165 = vpop.xlane.xlu0 %164
    %v166 = vrcp.pop %v156
    %v167 = vmul.f32 %v147, %v166
    %v168 = vrcp.pop %v159
    %v169 = vmul.f32 %v149, %v168
    %v170 = vrcp.pop %v162
    %v171 = vmul.f32 %v151, %v170
    %v172 = vrcp.pop %v165
    %v173 = vmul.f32 %v153, %v172
    %v174 = vld [vmem:[%s3] sm:$0xff]
    %v176 = vsel %vm129, %v167, 0
    %v179 = vsel %vm129, %v169, 0
    %v182 = vsel %vm129, %v171, 0
    %v185 = vsel %vm129, %v173, 0
    %187 = vmatprep.subr.mxu0 0.0
    %188 = vmatpush1.msra.mxu0 %v174
    %189 = vmatprep.subr.mxu0 0.0
    %190 = vmatpush1.msra.mxu0 0.0
    %191 = vmatprep.subr.mxu0 0.0
    %192 = vmatpush1.msra.mxu0 0.0
    %193 = vmatprep.subr.mxu0 0.0
    %194 = vmatpush1.msra.mxu0 0.0
    %195 = vmatprep.subr.mxu0 0.0
    %196 = vmatpush1.msra.mxu0 0.0
    %197 = vmatprep.subr.mxu0 0.0
    %198 = vmatpush1.msra.mxu0 0.0
    %199 = vmatprep.subr.mxu0 0.0
    %200 = vmatpush1.msra.mxu0 0.0
    %201 = vmatprep.subr.mxu0 0.0
    %202 = vmatpush1.msra.mxu0 0.0
    %203 = vmatprep.subr.mxu0 0.0
    %204 = vmatpush1.msra.mxu0 0.0
    %205 = vmatprep.subr.mxu0 0.0
    %206 = vmatpush1.msra.mxu0 0.0
    %207 = vmatprep.subr.mxu0 0.0
    %208 = vmatpush1.msra.mxu0 0.0
    %209 = vmatprep.subr.mxu0 0.0
    %210 = vmatpush1.msra.mxu0 0.0
    %211 = vmatprep.subr.mxu0 0.0
    %212 = vmatpush1.msra.mxu0 0.0
    %213 = vmatprep.subr.mxu0 0.0
    %214 = vmatpush1.msra.mxu0 0.0
    %215 = vmatprep.subr.mxu0 0.0
    %216 = vmatpush1.msra.mxu0 0.0
    %217 = vmatprep.subr.mxu0 0.0
    %218 = vmatpush1.msra.mxu0 0.0
    %219 = vmatprep.subr.mxu0 0.0
    %220 = vmatpush1.msra.mxu0 0.0
    %221 = vmatprep.subr.mxu0 0.0
    %222 = vmatpush1.msra.mxu0 0.0
    %223 = vmatprep.subr.mxu0 0.0
    %224 = vmatpush1.msra.mxu0 0.0
    %225 = vmatprep.subr.mxu0 0.0
    %226 = vmatpush1.msra.mxu0 0.0
    %227 = vmatprep.subr.mxu0 0.0
    %228 = vmatpush1.msra.mxu0 0.0
    %229 = vmatprep.subr.mxu0 0.0
    %230 = vmatpush1.msra.mxu0 0.0
    %231 = vmatprep.subr.mxu0 0.0
    %232 = vmatpush1.msra.mxu0 0.0
    %233 = vmatprep.subr.mxu0 0.0
    %234 = vmatpush1.msra.mxu0 0.0
    %235 = vmatprep.subr.mxu0 0.0
    %236 = vmatpush1.msra.mxu0 0.0
    %237 = vmatprep.subr.mxu0 0.0
    %238 = vmatpush1.msra.mxu0 0.0
    %239 = vmatprep.subr.mxu0 0.0
    %240 = vmatpush1.msra.mxu0 0.0
    %241 = vmatprep.subr.mxu0 0.0
    %242 = vmatpush1.msra.mxu0 0.0
    %243 = vmatprep.subr.mxu0 0.0
    %244 = vmatpush1.msra.mxu0 0.0
    %245 = vmatprep.subr.mxu0 0.0
    %246 = vmatpush1.msra.mxu0 0.0
    %247 = vmatprep.subr.mxu0 0.0
    %248 = vmatpush1.msra.mxu0 0.0
    %249 = vmatprep.subr.mxu0 0.0
    %250 = vmatpush1.msra.mxu0 0.0
    %251 = vmatprep.mubr.f32.mxu0 0.0
    %252 = vmatmul.mubr.f32.gmra.mrb[0].mxu0 %v176
    %v253 = vpop.f32.mrb[0].mxu0
    %v254 = vadd.f32 0.0, %v253
    %v255 = vpop.f32.mrb[0].mxu0
    %256 = vmatprep.mubr.f32.mxu0 0.0
    %257 = vmatmul.mubr.f32.gmra.mrb[0].mxu0 %v179
    %v258 = vpop.f32.mrb[0].mxu0
    %v259 = vadd.f32 0.0, %v258
    %v260 = vpop.f32.mrb[0].mxu0
    %261 = vmatprep.mubr.f32.mxu0 0.0
    %262 = vmatmul.mubr.f32.gmra.mrb[0].mxu0 %v182
    %v263 = vpop.f32.mrb[0].mxu0
    %v264 = vadd.f32 0.0, %v263
    %v265 = vpop.f32.mrb[0].mxu0
    %266 = vmatprep.mubr.f32.mxu0 0.0
    %267 = vmatmul.mubr.f32.gmra.mrb[0].mxu0 %v185
    %v268 = vpop.f32.mrb[0].mxu0
    %v269 = vadd.f32 0.0, %v268
    %v270 = vpop.f32.mrb[0].mxu0
    %271 = vdwg.mxu0
    %276 = vrot.lane.b32.xlu0 %v111, 120
    %v277 = vpop.permute.xlu0 %276
    %278 = vrot.lane.b32.xlu0 %v116, 120
    %v279 = vpop.permute.xlu0 %278
    %280 = vrot.lane.b32.xlu0 %v121, 120
    %v281 = vpop.permute.xlu0 %280
    %282 = vrot.lane.b32.xlu0 %v126, 120
    %v283 = vpop.permute.xlu0 %282
    %v288 = vmul.f32 %v254, %v277
    %v289 = vmul.f32 %v259, %v279
    %v290 = vmul.f32 %v264, %v281
    %v291 = vmul.f32 %v269, %v283
    %vm292 = vcmask 523264
    %293 = vst.msk [vmem:[#allocation2] sm:$0xff] %vm292, %v288
    %294 = vst.msk [vmem:[#allocation2 + $0x8] sm:$0xff] %vm292, %v289
    %295 = vst.msk [vmem:[#allocation2 + $0x10] sm:$0xff] %vm292, %v290
    %296 = vst.msk [vmem:[#allocation2 + $0x18] sm:$0xff] %vm292, %v291
    // Predicated region
    $region18: #{tpu_custom_call.1} parent=1 // pred_check
      _
    $region19: #{tpu_custom_call.1} parent=1 // pred_check_branch
      %298 = sbr.rel (0) target = $region21
    $region20: #{tpu_custom_call.1} parent=1 // pred_region
      %s300 = ssub.s32 512, 512
      %301 = vsyncadd [#allocation3], %s300
      %s302 = sshll.u32 [#allocation2], 4
      %s303 = int_to_ptr.vmem [resolvable:$true] %s302
      %308 = dma.vmem_to_hbm [thread:$0]  %s303, 512, %s4, [#allocation3], 128, 128, 8
    $region21: #{tpu_custom_call.1} parent=1 // pred_fallthru
      _
    // Predicated region
    $region22: #{tpu_custom_call.1} parent=1 // pred_check
      _
    $region23: #{tpu_custom_call.1} parent=1 // pred_check_branch
      %310 = sbr.rel (0) target = $region25
    $region24: #{tpu_custom_call.1} parent=1 // pred_region
      %311 = dma.done [#allocation3], 512
    $region25: #{tpu_custom_call.1} parent=1 // pred_fallthru
      _
    %312 = vsyncpa [#allocation3], 1

</llo_original>
